<compile_context>
chip_gen: v5e
topology: v5e:2x2
jax: 0.10.0
libtpu: 0.0.40
codegen_flags: <defaults>
</compile_context>

<pallas_src>
import functools
import math

import jax
import jax.numpy as jnp
from jax.experimental import pallas as pl
from jax.experimental.pallas import tpu as pltpu


def _round_up(x, m):
    return ((x + m - 1) // m) * m


def _cdiv(a, b):
    return (a + b - 1) // b


# --------------------------------------------------------------------------- #
# Kernel
# --------------------------------------------------------------------------- #
def _actor_kernel(x_ref, w1_ref, b1_ref, w2_ref, b2_ref, w3_ref, b3_ref,
                  o_ref, *, action_scale, action_bias):
    # Layer 1 in f32 (state_dim is tiny -> MXU cost negligible, better numerics).
    x = x_ref[...]
    h1 = jnp.dot(x, w1_ref[...], preferred_element_type=jnp.float32) + b1_ref[...]
    h1 = jnp.maximum(h1, 0.0).astype(jnp.bfloat16)
    # Layers 2/3: bf16 MXU inputs, f32 accumulation.
    h2 = jnp.dot(h1, w2_ref[...], preferred_element_type=jnp.float32) + b2_ref[...]
    h2 = jnp.maximum(h2, 0.0).astype(jnp.bfloat16)
    z = jnp.dot(h2, w3_ref[...], preferred_element_type=jnp.float32) + b3_ref[...]
    # tanh only over the real (action_dim) lanes; affine rescale into range.
    o_ref[...] = jnp.tanh(z) * action_scale + action_bias


# --------------------------------------------------------------------------- #
# One-time parameter preparation (cast + lane padding), done at param load.
# --------------------------------------------------------------------------- #
def prepare_actor_params(params):
    """Cast / zero-pad parameters once. Returns kernel-ready arrays.

    params: (w1, b1, w2, b2, w3, b3) with w as (in, out), b as (1, out).
    """
    w1, b1, w2, b2, w3, b3 = params
    state_dim, hidden_dim = w1.shape
    action_dim = w3.shape[1]
    hp = _round_up(hidden_dim, 128)  # lane-dense hidden dimension
    dh = hp - hidden_dim

    # Zero padding is a mathematical no-op: padded bias = 0 -> ReLU(0) = 0 ->
    # padded rows of the next weight are 0 -> contributes nothing.
    w1p = jnp.pad(w1.astype(jnp.float32), ((0, 0), (0, dh)))           # f32 (S, hp)
    b1p = jnp.pad(b1.astype(jnp.float32), ((0, 0), (0, dh)))           # f32 (1, hp)
    w2p = jnp.pad(w2.astype(jnp.float32), ((0, dh), (0, dh))).astype(jnp.bfloat16)
    b2p = jnp.pad(b2.astype(jnp.float32), ((0, 0), (0, dh)))           # f32 (1, hp)
    w3p = jnp.pad(w3.astype(jnp.float32), ((0, dh), (0, 0))).astype(jnp.bfloat16)
    b3p = b3.astype(jnp.float32)                                       # f32 (1, A)
    return (w1p, b1p, w2p, b2p, w3p, b3p)


# --------------------------------------------------------------------------- #
# Forward wrapper
# --------------------------------------------------------------------------- #
def actor_forward(state, prep_params, action_bound, *, tile_b=1024):
    """Pallas replication of ActorNetwork.forward.

    state:       (B, state_dim) float array
    prep_params: output of prepare_actor_params (cast/padded once, reused).
    """
    w1p, b1p, w2p, b2p, w3p, b3p = prep_params
    state_dim = w1p.shape[0]
    action_dim = w3p.shape[1]

    # NOTE: action_scale/bias are baked as compile-time constants; a different
    # action_bound triggers a (cheap) recompile.
    action_scale = float((action_bound[1] - action_bound[0]) / 2.0)
    action_bias = float((action_bound[1] + action_bound[0]) / 2.0)

    # --- Batch tiling --------------------------------------------------------
    B = state.shape[0]
    b8 = _round_up(B, 8)                    # sublane granularity
    n_steps = _cdiv(b8, tile_b)
    # v7x: keep >= 2 grid steps when there is enough work so both TensorCores
    # get a share under dimension_semantics=("parallel",). No-op on v5e/v6e.
    if n_steps == 1 and b8 >= 16:
        n_steps = 2
    tile_b_eff = _round_up(_cdiv(b8, n_steps), 8)
    b_pad = n_steps * tile_b_eff            # waste <= 8 rows per grid step

    x = state.astype(jnp.float32)
    if b_pad > B:
        x = jnp.pad(x, ((0, b_pad - B), (0, 0)))

    kernel = functools.partial(
        _actor_kernel, action_scale=action_scale, action_bias=action_bias)

    # Weights/biases: full-array block, constant (0, 0) index_map -> stay
    # VMEM-resident across the whole batch grid.
    def resident(shape):
        return pl.BlockSpec(shape, lambda i: (0, 0))

    out = pl.pallas_call(
        kernel,
        # Narrow output block: last block dim == full array dim (legal even if
        # < 128); 32x less HBM writeback than a 128-lane-padded f32 output.
        out_shape=jax.ShapeDtypeStruct((b_pad, action_dim), jnp.float32),
        grid_spec=pltpu.PrefetchScalarGridSpec(
            num_scalar_prefetch=0,
            grid=(n_steps,),
            in_specs=[
                pl.BlockSpec((tile_b_eff, state_dim), lambda i: (i, 0)),
                resident(w1p.shape), resident(b1p.shape),
                resident(w2p.shape), resident(b2p.shape),
                resident(w3p.shape), resident(b3p.shape),
            ],
            out_specs=pl.BlockSpec((tile_b_eff, action_dim), lambda i: (i, 0)),
        ),
        compiler_params=pltpu.CompilerParams(
            dimension_semantics=("parallel",),
            vmem_limit_bytes=32 * 1024 * 1024,
        ),
    )(x, w1p, b1p, w2p, b2p, w3p, b3p)

    # Strip batch padding (padded rows hold bias-propagated junk by design).
    return out[:B]


# --------------------------------------------------------------------------- #
# Init + reference
# --------------------------------------------------------------------------- #
def init_actor_params(key, state_dim, action_dim, hidden_dim=256):
    """xavier_uniform weights + constant 0.01 biases (matches _init_weights)."""
    def xavier(k, fan_in, fan_out):
        bound = math.sqrt(6.0 / (fan_in + fan_out))
        return jax.random.uniform(k, (fan_in, fan_out), jnp.float32, -bound, bound)

    k1, k2, k3 = jax.random.split(key, 3)
    w1 = xavier(k1, state_dim, hidden_dim)
    b1 = jnp.full((1, hidden_dim), 0.01, jnp.float32)
    w2 = xavier(k2, hidden_dim, hidden_dim)
    b2 = jnp.full((1, hidden_dim), 0.01, jnp.float32)
    w3 = xavier(k3, hidden_dim, action_dim)
    b3 = jnp.full((1, action_dim), 0.01, jnp.float32)
    return (w1, b1, w2, b2, w3, b3)


def actor_forward_ref(state, params, action_bound):
    """Plain-JAX f32 reference for correctness checking."""
    w1, b1, w2, b2, w3, b3 = params
    scale = (action_bound[1] - action_bound[0]) / 2.0
    bias = (action_bound[1] + action_bound[0]) / 2.0
    h1 = jnp.maximum(state @ w1 + b1, 0.0)
    h2 = jnp.maximum(h1 @ w2 + b2, 0.0)
    return jnp.tanh(h2 @ w3 + b3) * scale + bias


if __name__ == "__main__":
    key = jax.random.PRNGKey(0)
    k_params, k_state1, k_state2 = jax.random.split(key, 3)

    state_dim = 16
    action_dim = 4
    hidden_dim = 32
    action_bound = (-2.0, 2.0)

    params = init_actor_params(k_params, state_dim, action_dim, hidden_dim)
    prep = prepare_actor_params(params)      # one-time cast/pad (param load)

    # Case 1: tiny batch, single grid step.
    state1 = jax.random.normal(k_state1, (8, state_dim), jnp.float32)
    out1 = jax.block_until_ready(actor_forward(state1, prep, action_bound))
    ref1 = actor_forward_ref(state1, params, action_bound)
    assert out1.shape == (8, action_dim)
    assert jnp.allclose(out1, ref1, atol=3e-2, rtol=3e-2), (
        f"max abs err {jnp.max(jnp.abs(out1 - ref1))}")

    # Case 2: ragged batch exercising the multi-step (>=2) grid path.
    state2 = jax.random.normal(k_state2, (40, state_dim), jnp.float32)
    out2 = jax.block_until_ready(actor_forward(state2, prep, action_bound))
    ref2 = actor_forward_ref(state2, params, action_bound)
    assert out2.shape == (40, action_dim)
    assert jnp.allclose(out2, ref2, atol=3e-2, rtol=3e-2), (
        f"max abs err {jnp.max(jnp.abs(out2 - ref2))}")

    print("KERNEL_OK")
</pallas_src>

<mosaic_0001>
module attributes {stable_mosaic.version = 11 : i64} {
  func.func @_actor_kernel(%arg0: i32, %arg1: memref<8x16xf32, #tpu.memory_space<vmem>>, %arg2: memref<16x128xf32, #tpu.memory_space<vmem>>, %arg3: memref<1x128xf32, #tpu.memory_space<vmem>>, %arg4: memref<128x128xbf16, #tpu.memory_space<vmem>>, %arg5: memref<1x128xf32, #tpu.memory_space<vmem>>, %arg6: memref<128x4xbf16, #tpu.memory_space<vmem>>, %arg7: memref<1x4xf32, #tpu.memory_space<vmem>>, %arg8: memref<8x4xf32, #tpu.memory_space<vmem>>) attributes {dimension_semantics = [#tpu.dimension_semantics<parallel>], iteration_bounds = array<i64: 1>, scalar_prefetch = 0 : i64, scratch_operands = 0 : i64, tpu.core_type = #tpu.core_type<tc>, window_params = [{transform_indices = @transform_0, window_bounds = array<i64: 8, 16>}, {pipeline_mode = #tpu.pipeline_mode<synchronous>, transform_indices = @transform_1, window_bounds = array<i64: 16, 128>}, {pipeline_mode = #tpu.pipeline_mode<synchronous>, transform_indices = @transform_2, window_bounds = array<i64: 1, 128>}, {pipeline_mode = #tpu.pipeline_mode<synchronous>, transform_indices = @transform_3, window_bounds = array<i64: 128, 128>}, {pipeline_mode = #tpu.pipeline_mode<synchronous>, transform_indices = @transform_4, window_bounds = array<i64: 1, 128>}, {pipeline_mode = #tpu.pipeline_mode<synchronous>, transform_indices = @transform_5, window_bounds = array<i64: 128, 4>}, {pipeline_mode = #tpu.pipeline_mode<synchronous>, transform_indices = @transform_6, window_bounds = array<i64: 1, 4>}, {transform_indices = @transform_7, window_bounds = array<i64: 8, 4>}]} {
    %c0 = arith.constant 0 : index
    %c0_0 = arith.constant 0 : index
    %0 = vector.load %arg1[%c0, %c0_0] : memref<8x16xf32, #tpu.memory_space<vmem>>, vector<8x16xf32>
    %c0_1 = arith.constant 0 : index
    %c0_2 = arith.constant 0 : index
    %1 = vector.load %arg2[%c0_1, %c0_2] : memref<16x128xf32, #tpu.memory_space<vmem>>, vector<16x128xf32>
    %cst = arith.constant dense<0.000000e+00> : vector<8x128xf32>
    %2 = tpu.matmul %0, %1, %cst {dimension_numbers = #tpu.dot_dimension_numbers<[1], [0], [0], [1], [0, 0, 1, 1], [], []>} : vector<8x16xf32>, vector<16x128xf32>, vector<8x128xf32> -> vector<8x128xf32>
    %c0_3 = arith.constant 0 : index
    %c0_4 = arith.constant 0 : index
    %3 = vector.load %arg3[%c0_3, %c0_4] : memref<1x128xf32, #tpu.memory_space<vmem>>, vector<1x128xf32>
    %4 = vector.broadcast %3 : vector<1x128xf32> to vector<8x128xf32>
    %5 = arith.addf %2, %4 : vector<8x128xf32>
    %cst_5 = arith.constant 0.000000e+00 : f32
    %6 = vector.broadcast %cst_5 : f32 to vector<8x128xf32>
    %7 = arith.maximumf %5, %6 : vector<8x128xf32>
    %8 = arith.truncf %7 : vector<8x128xf32> to vector<8x128xbf16>
    %c0_6 = arith.constant 0 : index
    %c0_7 = arith.constant 0 : index
    %9 = vector.load %arg4[%c0_6, %c0_7] : memref<128x128xbf16, #tpu.memory_space<vmem>>, vector<128x128xbf16>
    %cst_8 = arith.constant dense<0.000000e+00> : vector<8x128xf32>
    %10 = tpu.matmul %8, %9, %cst_8 {dimension_numbers = #tpu.dot_dimension_numbers<[1], [0], [0], [1], [0, 0, 1, 1], [], []>} : vector<8x128xbf16>, vector<128x128xbf16>, vector<8x128xf32> -> vector<8x128xf32>
    %c0_9 = arith.constant 0 : index
    %c0_10 = arith.constant 0 : index
    %11 = vector.load %arg5[%c0_9, %c0_10] : memref<1x128xf32, #tpu.memory_space<vmem>>, vector<1x128xf32>
    %12 = vector.broadcast %11 : vector<1x128xf32> to vector<8x128xf32>
    %13 = arith.addf %10, %12 : vector<8x128xf32>
    %cst_11 = arith.constant 0.000000e+00 : f32
    %14 = vector.broadcast %cst_11 : f32 to vector<8x128xf32>
    %15 = arith.maximumf %13, %14 : vector<8x128xf32>
    %16 = arith.truncf %15 : vector<8x128xf32> to vector<8x128xbf16>
    %c0_12 = arith.constant 0 : index
    %c0_13 = arith.constant 0 : index
    %17 = vector.load %arg6[%c0_12, %c0_13] : memref<128x4xbf16, #tpu.memory_space<vmem>>, vector<128x4xbf16>
    %cst_14 = arith.constant dense<0.000000e+00> : vector<8x4xf32>
    %18 = tpu.matmul %16, %17, %cst_14 {dimension_numbers = #tpu.dot_dimension_numbers<[1], [0], [0], [1], [0, 0, 1, 1], [], []>} : vector<8x128xbf16>, vector<128x4xbf16>, vector<8x4xf32> -> vector<8x4xf32>
    %c0_15 = arith.constant 0 : index
    %c0_16 = arith.constant 0 : index
    %19 = vector.load %arg7[%c0_15, %c0_16] : memref<1x4xf32, #tpu.memory_space<vmem>>, vector<1x4xf32>
    %20 = vector.broadcast %19 : vector<1x4xf32> to vector<8x4xf32>
    %21 = arith.addf %18, %20 : vector<8x4xf32>
    %22 = math.tanh %21 : vector<8x4xf32>
    %cst_17 = arith.constant 2.000000e+00 : f32
    %23 = vector.broadcast %cst_17 : f32 to vector<8x4xf32>
    %24 = arith.mulf %22, %23 : vector<8x4xf32>
    %cst_18 = arith.constant 0.000000e+00 : f32
    %25 = vector.broadcast %cst_18 : f32 to vector<8x4xf32>
    %26 = arith.addf %24, %25 : vector<8x4xf32>
    %c0_19 = arith.constant 0 : index
    %c0_20 = arith.constant 0 : index
    %27 = vector.load %arg8[%c0_19, %c0_20] : memref<8x4xf32, #tpu.memory_space<vmem>>, vector<8x4xf32>
    tpu.vector_store %arg8[%c0_19, %c0_20], %26 {strides = array<i32>} : memref<8x4xf32, #tpu.memory_space<vmem>>, vector<8x4xf32>,
    return
  }
  func.func @transform_0(%arg0: i32) -> (i32, i32) {
    %c0_i32 = arith.constant 0 : i32
    %c0_i32_0 = arith.constant 0 : i32
    return %arg0, %c0_i32 : i32, i32
  }
  func.func @transform_1(%arg0: i32) -> (i32, i32) {
    %c0_i32 = arith.constant 0 : i32
    %c0_i32_0 = arith.constant 0 : i32
    %c0_i32_1 = arith.constant 0 : i32
    return %c0_i32, %c0_i32_0 : i32, i32
  }
  func.func @transform_2(%arg0: i32) -> (i32, i32) {
    %c0_i32 = arith.constant 0 : i32
    %c0_i32_0 = arith.constant 0 : i32
    %c0_i32_1 = arith.constant 0 : i32
    return %c0_i32, %c0_i32_0 : i32, i32
  }
  func.func @transform_3(%arg0: i32) -> (i32, i32) {
    %c0_i32 = arith.constant 0 : i32
    %c0_i32_0 = arith.constant 0 : i32
    %c0_i32_1 = arith.constant 0 : i32
    return %c0_i32, %c0_i32_0 : i32, i32
  }
  func.func @transform_4(%arg0: i32) -> (i32, i32) {
    %c0_i32 = arith.constant 0 : i32
    %c0_i32_0 = arith.constant 0 : i32
    %c0_i32_1 = arith.constant 0 : i32
    return %c0_i32, %c0_i32_0 : i32, i32
  }
  func.func @transform_5(%arg0: i32) -> (i32, i32) {
    %c0_i32 = arith.constant 0 : i32
    %c0_i32_0 = arith.constant 0 : i32
    %c0_i32_1 = arith.constant 0 : i32
    return %c0_i32, %c0_i32_0 : i32, i32
  }
  func.func @transform_6(%arg0: i32) -> (i32, i32) {
    %c0_i32 = arith.constant 0 : i32
    %c0_i32_0 = arith.constant 0 : i32
    %c0_i32_1 = arith.constant 0 : i32
    return %c0_i32, %c0_i32_0 : i32, i32
  }
  func.func @transform_7(%arg0: i32) -> (i32, i32) {
    %c0_i32 = arith.constant 0 : i32
    %c0_i32_0 = arith.constant 0 : i32
    return %arg0, %c0_i32 : i32, i32
  }
}

</mosaic_0001>

<llo_original>
// kernel: tpu_custom_call.1
$region0: #{tpu_custom_call.1}
  #allocation0 [shape = 'u32[]', space=smem, size = 0x4, offset = 0x4, fixed_abs, tag = 'smem constant byte address 0x4 - core index']
  #allocation1 [shape = 'u32[72,128]{1,0:T(1,128)}', space=vmem, size = 0x9000, scoped, tag = 'internal scratch']
  %s0 = inlined_call_operand.hbm [shape: f32[8,16], index: 0, kind: input, shape index: {}]
  %s1 = inlined_call_operand.hbm [shape: f32[16,128], index: 1, kind: input, shape index: {}]
  %s2 = inlined_call_operand.vmem [shape: f32[1,128], index: 2, kind: input, shape index: {}]
  %s3 = inlined_call_operand.vmem [shape: bf16[128,128], index: 3, kind: input, shape index: {}]
  %s4 = inlined_call_operand.vmem [shape: f32[1,128], index: 4, kind: input, shape index: {}]
  %s5 = inlined_call_operand.vmem [shape: bf16[128,4], index: 5, kind: input, shape index: {}]
  %s6 = inlined_call_operand.vmem [shape: f32[1,4], index: 6, kind: input, shape index: {}]
  %s7 = inlined_call_operand.vmem [shape: f32[8,4], index: 7, kind: output, shape index: {}]
  %s8 = sld [smem:[#allocation0]]
  $region46: #{tpu_custom_call.1} parent=0
    _
  %s10 = ssub.s32 1, %s8
  %s11 = scalar_select 0, %s10, %s8
  $region1: #{tpu_custom_call.1} parent=0
    #allocation2 [shape = 'u8[4096]{0}', space=vmem, size = 0x1000, scoped, tag = 'input window, operand 0, single buffered']
    #allocation3 [shape = 's32[1]{0}', space=sflag, size = 0x4, scoped, tag = 'scoped memory for tpu_custom_call.1']
    #allocation4 [shape = 'u8[8192]{0}', space=vmem, size = 0x2000, scoped, tag = 'input window, operand 1, single buffered']
    #allocation5 [shape = 's32[1]{0}', space=sflag, size = 0x4, scoped, tag = 'scoped memory for tpu_custom_call.1']
    %12 = vsyncpa [#allocation3], 0
    %13 = vsyncpa [#allocation5], 0
    // Predicated region
    $region2: #{tpu_custom_call.1} parent=1 // pred_check
      _
    $region3: #{tpu_custom_call.1} parent=1 // pred_check_branch
      %15 = sbr.rel (0) target = $region5
    $region4: #{tpu_custom_call.1} parent=1 // pred_region
      %17 = vsyncadd [#allocation3], 0
      %s19 = sshll.u32 %s0, 4
      %s20 = int_to_ptr.hbm [resolvable:$true] %s19
      %s21 = sshll.u32 [#allocation2], 4
      %s22 = int_to_ptr.vmem [resolvable:$true] %s21
      %24 = dma.hbm_to_vmem [thread:$0]  %s20, 128, %s22, [#allocation3]
    $region5: #{tpu_custom_call.1} parent=1 // pred_fallthru
      _
    // Predicated region
    $region6: #{tpu_custom_call.1} parent=1 // pred_check
      _
    $region7: #{tpu_custom_call.1} parent=1 // pred_check_branch
      %26 = sbr.rel (0) target = $region9
    $region8: #{tpu_custom_call.1} parent=1 // pred_region
      %28 = vsyncadd [#allocation5], 0
      %s29 = sshll.u32 %s1, 4
      %s30 = int_to_ptr.hbm [resolvable:$true] %s29
      %s31 = sshll.u32 [#allocation4], 4
      %s32 = int_to_ptr.vmem [resolvable:$true] %s31
      %37 = dma.hbm_to_vmem [thread:$0]  %s30, 256, %s32, [#allocation5], 128, 128, 8
    $region9: #{tpu_custom_call.1} parent=1 // pred_fallthru
      _
    // Predicated region
    $region10: #{tpu_custom_call.1} parent=1 // pred_check
      _
    $region11: #{tpu_custom_call.1} parent=1 // pred_check_branch
      %39 = sbr.rel (0) target = $region13
    $region12: #{tpu_custom_call.1} parent=1 // pred_region
      _
    $region13: #{tpu_custom_call.1} parent=1 // pred_fallthru
      _
    // Predicated region
    $region14: #{tpu_custom_call.1} parent=1 // pred_check
      _
    $region15: #{tpu_custom_call.1} parent=1 // pred_check_branch
      %41 = sbr.rel (0) target = $region17
    $region16: #{tpu_custom_call.1} parent=1 // pred_region
      _
    $region17: #{tpu_custom_call.1} parent=1 // pred_fallthru
      _
    // Predicated region
    $region18: #{tpu_custom_call.1} parent=1 // pred_check
      _
    $region19: #{tpu_custom_call.1} parent=1 // pred_check_branch
      %43 = sbr.rel (0) target = $region21
    $region20: #{tpu_custom_call.1} parent=1 // pred_region
      _
    $region21: #{tpu_custom_call.1} parent=1 // pred_fallthru
      _
    // Predicated region
    $region22: #{tpu_custom_call.1} parent=1 // pred_check
      _
    $region23: #{tpu_custom_call.1} parent=1 // pred_check_branch
      %45 = sbr.rel (0) target = $region25
    $region24: #{tpu_custom_call.1} parent=1 // pred_region
      _
    $region25: #{tpu_custom_call.1} parent=1 // pred_fallthru
      _
    // Predicated region
    $region26: #{tpu_custom_call.1} parent=1 // pred_check
      _
    $region27: #{tpu_custom_call.1} parent=1 // pred_check_branch
      %47 = sbr.rel (0) target = $region29
    $region28: #{tpu_custom_call.1} parent=1 // pred_region
      _
    $region29: #{tpu_custom_call.1} parent=1 // pred_fallthru
      _
    // Predicated region
    $region30: #{tpu_custom_call.1} parent=1 // pred_check
      _
    $region31: #{tpu_custom_call.1} parent=1 // pred_check_branch
      %49 = sbr.rel (0) target = $region33
    $region32: #{tpu_custom_call.1} parent=1 // pred_region
      %51 = dma.done [#allocation3], 128
    $region33: #{tpu_custom_call.1} parent=1 // pred_fallthru
      _
    // Predicated region
    $region34: #{tpu_custom_call.1} parent=1 // pred_check
      _
    $region35: #{tpu_custom_call.1} parent=1 // pred_check_branch
      %53 = sbr.rel (0) target = $region37
    $region36: #{tpu_custom_call.1} parent=1 // pred_region
      %55 = dma.done [#allocation5], 256
    $region37: #{tpu_custom_call.1} parent=1 // pred_fallthru
      _
    %v56 = vld [vmem:[#allocation2] sm:$0xff]
    %v57 = vld [vmem:[#allocation4] sm:$0xff]
    %v58 = vld [vmem:[#allocation4 + $0x8] sm:$0xff]
    %v59 = vld [vmem:[%s2] sm:$0x1]
    %v61 = vperm.slane %v59, 0
    %vm63 = vcmask 130048
    %v65 = vsel %vm63, %v56, 0
    %67 = vmatpush.msra.mxu0 0.0
    %68 = vmatpush.msra.mxu0 0.0
    %69 = vmatpush.msra.mxu0 0.0
    %70 = vmatpush.msra.mxu0 0.0
    %71 = vmatpush.msra.mxu0 0.0
    %72 = vmatpush.msra.mxu0 0.0
    %73 = vmatpush.msra.mxu0 0.0
    %74 = vmatpush.msra.mxu0 0.0
    %75 = vmatpush.msra.mxu0 0.0
    %76 = vmatpush.msra.mxu0 0.0
    %77 = vmatpush.msra.mxu0 0.0
    %78 = vmatpush.msra.mxu0 0.0
    %79 = vmatpush.msra.mxu0 0.0
    %80 = vmatpush.msra.mxu0 0.0
    %81 = vmatpush.msra.mxu0 %v58
    %82 = vmatpush.msra.mxu0 %v57
    %83 = vmatmul.f32.gmra.mxu0 %v65
    %v84 = vpop.f32.mrf.mxu0
    %v85 = vadd.f32 %v61, %v84
    %86 = vdwg.mxu0
    %v87 = vmax.f32 %v85, 0.0
    %v88 = vpack.c.bf16 %v87, %v87
    %v89 = vld [vmem:[%s3] sm:$0xf]
    %v90 = vld [vmem:[%s3 + $0x4] sm:$0xf]
    %v91 = vld [vmem:[%s3 + $0x8] sm:$0xf]
    %v92 = vld [vmem:[%s3 + $0xc] sm:$0xf]
    %v93 = vld [vmem:[%s3 + $0x10] sm:$0xf]
    %v94 = vld [vmem:[%s3 + $0x14] sm:$0xf]
    %v95 = vld [vmem:[%s3 + $0x18] sm:$0xf]
    %v96 = vld [vmem:[%s3 + $0x1c] sm:$0xf]
    %v97 = vld [vmem:[%s3 + $0x20] sm:$0xf]
    %v98 = vld [vmem:[%s3 + $0x24] sm:$0xf]
    %v99 = vld [vmem:[%s3 + $0x28] sm:$0xf]
    %v100 = vld [vmem:[%s3 + $0x2c] sm:$0xf]
    %v101 = vld [vmem:[%s3 + $0x30] sm:$0xf]
    %v102 = vld [vmem:[%s3 + $0x34] sm:$0xf]
    %v103 = vld [vmem:[%s3 + $0x38] sm:$0xf]
    %v104 = vld [vmem:[%s3 + $0x3c] sm:$0xf]
    %v105 = vld [vmem:[%s4] sm:$0x1]
    %v107 = vperm.slane %v105, 0
    %v125 = vunpack.c.l.b16 %v89
    %v126 = vunpack.c.l.b16 %v90
    %v127 = vunpack.c.l.b16 %v91
    %v128 = vunpack.c.l.b16 %v92
    %v129 = vunpack.c.l.b16 %v93
    %v130 = vunpack.c.l.b16 %v94
    %v131 = vunpack.c.l.b16 %v95
    %v132 = vunpack.c.l.b16 %v96
    %v133 = vunpack.c.l.b16 %v97
    %v134 = vunpack.c.l.b16 %v98
    %v135 = vunpack.c.l.b16 %v99
    %v136 = vunpack.c.l.b16 %v100
    %v137 = vunpack.c.l.b16 %v101
    %v138 = vunpack.c.l.b16 %v102
    %v139 = vunpack.c.l.b16 %v103
    %v140 = vunpack.c.l.b16 %v104
    %v141 = vpack.c.b16 %v126, %v125
    %v142 = vpack.c.b16 %v128, %v127
    %v143 = vpack.c.b16 %v130, %v129
    %v144 = vpack.c.b16 %v132, %v131
    %v145 = vpack.c.b16 %v134, %v133
    %v146 = vpack.c.b16 %v136, %v135
    %v147 = vpack.c.b16 %v138, %v137
    %v148 = vpack.c.b16 %v140, %v139
    %157 = vmatpush.bf16.msra.mxu0 %v148
    %158 = vmatpush.bf16.msra.mxu0 %v147
    %159 = vmatpush.bf16.msra.mxu0 %v146
    %160 = vmatpush.bf16.msra.mxu0 %v145
    %161 = vmatpush.bf16.msra.mxu0 %v144
    %162 = vmatpush.bf16.msra.mxu0 %v143
    %163 = vmatpush.bf16.msra.mxu0 %v142
    %164 = vmatpush.bf16.msra.mxu0 %v141
    %165 = vmatmul.bf16.gmra.mxu0 %v88
    %v166 = vpop.f32.mrf.mxu0
    %v167 = vadd.f32 %v107, %v166
    %v168 = vpop.f32.mrf.mxu0
    %169 = vdwg.mxu0
    %v170 = vmax.f32 %v167, 0.0
    %v171 = vpack.c.bf16 %v170, %v170
    %v172 = vld [vmem:[%s5] sm:$0xf]
    %v173 = vld [vmem:[%s5 + $0x4] sm:$0xf]
    %v174 = vld [vmem:[%s5 + $0x8] sm:$0xf]
    %v175 = vld [vmem:[%s5 + $0xc] sm:$0xf]
    %v176 = vld [vmem:[%s5 + $0x10] sm:$0xf]
    %v177 = vld [vmem:[%s5 + $0x14] sm:$0xf]
    %v178 = vld [vmem:[%s5 + $0x18] sm:$0xf]
    %v179 = vld [vmem:[%s5 + $0x1c] sm:$0xf]
    %v180 = vld [vmem:[%s5 + $0x20] sm:$0xf]
    %v181 = vld [vmem:[%s5 + $0x24] sm:$0xf]
    %v182 = vld [vmem:[%s5 + $0x28] sm:$0xf]
    %v183 = vld [vmem:[%s5 + $0x2c] sm:$0xf]
    %v184 = vld [vmem:[%s5 + $0x30] sm:$0xf]
    %v185 = vld [vmem:[%s5 + $0x34] sm:$0xf]
    %v186 = vld [vmem:[%s5 + $0x38] sm:$0xf]
    %v187 = vld [vmem:[%s5 + $0x3c] sm:$0xf]
    %v188 = vld [vmem:[%s6] sm:$0x1]
    %v190 = vperm.slane %v188, 0
    %v208 = vunpack.c.l.b16 %v172
    %v209 = vunpack.c.l.b16 %v173
    %v210 = vunpack.c.l.b16 %v174
    %v211 = vunpack.c.l.b16 %v175
    %v212 = vunpack.c.l.b16 %v176
    %v213 = vunpack.c.l.b16 %v177
    %v214 = vunpack.c.l.b16 %v178
    %v215 = vunpack.c.l.b16 %v179
    %v216 = vunpack.c.l.b16 %v180
    %v217 = vunpack.c.l.b16 %v181
    %v218 = vunpack.c.l.b16 %v182
    %v219 = vunpack.c.l.b16 %v183
    %v220 = vunpack.c.l.b16 %v184
    %v221 = vunpack.c.l.b16 %v185
    %v222 = vunpack.c.l.b16 %v186
    %v223 = vunpack.c.l.b16 %v187
    %v224 = vpack.c.b16 %v209, %v208
    %v225 = vpack.c.b16 %v211, %v210
    %v226 = vpack.c.b16 %v213, %v212
    %v227 = vpack.c.b16 %v215, %v214
    %v228 = vpack.c.b16 %v217, %v216
    %v229 = vpack.c.b16 %v219, %v218
    %v230 = vpack.c.b16 %v221, %v220
    %v231 = vpack.c.b16 %v223, %v222
    %240 = vmatpush.bf16.msra.mxu0 %v231
    %241 = vmatpush.bf16.msra.mxu0 %v230
    %242 = vmatpush.bf16.msra.mxu0 %v229
    %243 = vmatpush.bf16.msra.mxu0 %v228
    %244 = vmatpush.bf16.msra.mxu0 %v227
    %245 = vmatpush.bf16.msra.mxu0 %v226
    %246 = vmatpush.bf16.msra.mxu0 %v225
    %247 = vmatpush.bf16.msra.mxu0 %v224
    %248 = vmatmul.bf16.gmra.mxu0 %v171
    %v249 = vpop.f32.mrf.mxu0
    %v250 = vadd.f32 %v190, %v249
    %v251 = vpop.f32.mrf.mxu0
    %252 = vdwg.mxu0
    %v253 = vtanh.pop %v250
    %v254 = vmul.f32 %v253, 2.0
    %v255 = vadd.f32 %v254, 0.0
    %vm256 = vcmask 31744
    %257 = vst.msk [vmem:[%s7] sm:$0xff] %vm256, %v255
    // Predicated region
    $region38: #{tpu_custom_call.1} parent=1 // pred_check
      _
    $region39: #{tpu_custom_call.1} parent=1 // pred_check_branch
      %259 = sbr.rel (0) target = $region41
    $region40: #{tpu_custom_call.1} parent=1 // pred_region
      _
    $region41: #{tpu_custom_call.1} parent=1 // pred_fallthru
      _
    // Predicated region
    $region42: #{tpu_custom_call.1} parent=1 // pred_check
      _
    $region43: #{tpu_custom_call.1} parent=1 // pred_check_branch
      %261 = sbr.rel (0) target = $region45
    $region44: #{tpu_custom_call.1} parent=1 // pred_region
      _
    $region45: #{tpu_custom_call.1} parent=1 // pred_fallthru
      _
    %262 = vsyncpa [#allocation3], 1
    %263 = vsyncpa [#allocation5], 1

</llo_original>
